<compile_context>
chip_gen: v7x
topology: tpu7x:2x2x1
jax: 0.10.0
libtpu: 0.0.40
codegen_flags: <defaults>
</compile_context>

<pallas_src>
import functools

import jax
import jax.numpy as jnp
from jax import lax
from jax.experimental import pallas as pl
from jax.experimental.pallas import tpu as pltpu


def _round_up(a: int, b: int) -> int:
    return (a + b - 1) // b * b


def _sae_topk_kernel(x_ref, w_enc_ref, b_fused_ref, w_dec_ref, b_dec_ref,
                     *refs, k: int, emit_features: bool):
    # refs = outputs..., scratch...
    if emit_features:
        xhat_ref, enc_ref, acc_ref, rv_ref = refs
    else:
        xhat_ref, acc_ref, rv_ref = refs
        enc_ref = None

    p = pl.program_id(1)           # phase: 0 = running top-k scan, 1 = scatter+decode
    j = pl.program_id(2)           # d_sae tile index
    nj = pl.num_programs(2)

    # Encoder tile: h = relu(x @ W_enc[:, tile] + b_fused[tile]).
    # Weights stay in their native dtype (no f32 upcast); f32 accumulation via
    # preferred_element_type.  b_dec was folded into b_fused host-side.
    pre = jnp.dot(x_ref[...], w_enc_ref[...], preferred_element_type=jnp.float32)
    h = jnp.maximum(pre + b_fused_ref[...].astype(jnp.float32), 0.0)   # (tb, ts) f32

    tb = h.shape[0]
    kpad = rv_ref.shape[-1]
    neg_inf = jnp.float32(-jnp.inf)

    @pl.when(jnp.logical_and(p == 0, j == 0))
    def _init_running_topk():
        rv_ref[...] = jnp.full(rv_ref.shape, neg_inf, jnp.float32)

    @pl.when(p == 0)
    def _phase0_running_topk():
        # Merge this tile's activations into the running per-row top-k value
        # buffer (kept in descending order in columns 0..k-1).  Each iteration
        # does ONE wide cross-lane max over the (tb, ts) tile plus a 1-vreg max
        # over the 128-wide running buffer (XLU slot, nearly free next to the
        # MXU work).  All entries equal to the current max are retired at once;
        # for post-ReLU float data the only common ties are zeros, which yield
        # an identical dense `enc` (zeros scatter to zeros).
        # TODO(synk): per-chunk candidate pre-reduction before the k-iteration
        # merge for very large k.
        kcol = lax.broadcasted_iota(jnp.int32, (tb, kpad), 1)

        def merge(c, carry):
            rv_new, w_rv, w_h = carry
            m = jnp.maximum(jnp.max(w_rv, axis=-1, keepdims=True),
                            jnp.max(w_h, axis=-1, keepdims=True))      # (tb, 1)
            rv_new = jnp.where(kcol == c, m, rv_new)     # c-th largest -> column c
            w_rv = jnp.where(w_rv == m, neg_inf, w_rv)
            w_h = jnp.where(w_h == m, neg_inf, w_h)
            return rv_new, w_rv, w_h

        rv0 = jnp.full((tb, kpad), neg_inf, jnp.float32)
        unroll = True if k <= 32 else 8   # bound compile time for large k
        rv_new, _, _ = lax.fori_loop(0, k, merge, (rv0, rv_ref[...], h),
                                     unroll=unroll)
        rv_ref[...] = rv_new

    @pl.when(p == 1)
    def _phase1_scatter_decode():
        @pl.when(j == 0)
        def _init_acc():
            acc_ref[...] = jnp.zeros(acc_ref.shape, jnp.float32)

        # Threshold = k-th largest per row (column k-1 of the descending
        # running buffer).  Everything >= it is kept; the scatter is a single
        # compare/select — no index bookkeeping needed.
        thr = rv_ref[...][:, k - 1:k]                   # (tb, 1)
        enc_t = jnp.where(h >= thr, h, 0.0)             # (tb, ts) f32

        # TODO(synk): exploit k-sparsity of enc_t here via a gather of the k
        # selected W_dec rows (scalar-prefetch / manual DMA) instead of the
        # dense (tb, ts) x (ts, d_in) matmul.
        acc_ref[...] += jnp.dot(enc_t.astype(w_dec_ref.dtype), w_dec_ref[...],
                                preferred_element_type=jnp.float32)

        if enc_ref is not None:
            enc_ref[...] = enc_t.astype(enc_ref.dtype)

        @pl.when(j == nj - 1)
        def _writeback():
            xhat_ref[...] = (acc_ref[...] +
                             b_dec_ref[...].astype(jnp.float32)).astype(xhat_ref.dtype)


def sae_topk_forward(x, w_enc, b_enc, w_dec, b_dec, *, k: int,
                     tb: int = 256, ts: int = 512,
                     output_features: bool = False):
    """TopK-SAE forward.  Returns x_hat (and dense encoded acts if requested)."""
    B, d_in = x.shape
    d_sae = w_enc.shape[1]
    assert 1 <= k <= d_sae, "k must satisfy 1 <= k <= d_sae"

    # Fold the decoder-bias pre-subtraction into the encoder bias (host/XLA side):
    #   (x - b_dec) @ W_enc + b_enc  ==  x @ W_enc + (b_enc - b_dec @ W_enc)
    b_fused = (b_enc.astype(jnp.float32)
               - b_dec.astype(jnp.float32) @ w_enc.astype(jnp.float32))

    # Tile sizes.  tb defaults to 256 to fill the MXU M dimension at production
    # batch sizes (clamped for tiny B); ts is the streamed d_sae tile width.
    tb_eff = min(tb, _round_up(B, 8))
    ts_eff = min(ts, _round_up(d_sae, 128))
    Bp = _round_up(B, tb_eff)
    Sp = _round_up(d_sae, ts_eff)
    kpad = _round_up(max(k, 1), 128)
    nb, nj = Bp // tb_eff, Sp // ts_eff

    # Zero-pad B and d_sae to tile multiples.  Zero rows/columns are inert:
    # they produce h == 0, which never displaces a genuine top-k activation
    # and contributes nothing to the decode; padded outputs are sliced off.
    xp = x if Bp == B else jnp.pad(x, ((0, Bp - B), (0, 0)))
    w_enc_p = w_enc if Sp == d_sae else jnp.pad(w_enc, ((0, 0), (0, Sp - d_sae)))
    w_dec_p = w_dec if Sp == d_sae else jnp.pad(w_dec, ((0, Sp - d_sae), (0, 0)))
    b_fused_p = (b_fused if Sp == d_sae
                 else jnp.pad(b_fused, (0, Sp - d_sae))).reshape(1, Sp)
    b_dec2 = b_dec.reshape(1, d_in)

    kernel = functools.partial(_sae_topk_kernel, k=k,
                               emit_features=output_features)

    if output_features:
        out_shape = (jax.ShapeDtypeStruct((Bp, d_in), x.dtype),
                     jax.ShapeDtypeStruct((Bp, Sp), x.dtype))
        out_specs = (pl.BlockSpec((tb_eff, d_in), lambda bi, p, j: (bi, 0)),
                     pl.BlockSpec((tb_eff, ts_eff), lambda bi, p, j: (bi, j * p)))
    else:
        # No dense `enc` output at all -> no B*d_sae HBM writeback.
        out_shape = jax.ShapeDtypeStruct((Bp, d_in), x.dtype)
        out_specs = pl.BlockSpec((tb_eff, d_in), lambda bi, p, j: (bi, 0))

    outs = pl.pallas_call(
        kernel,
        out_shape=out_shape,
        grid=(nb, 2, nj),                    # (batch tiles, phase, d_sae tiles)
        in_specs=[
            pl.BlockSpec((tb_eff, d_in), lambda bi, p, j: (bi, 0)),     # x (resident per batch tile)
            pl.BlockSpec((d_in, ts_eff), lambda bi, p, j: (0, j)),      # W_enc column tile (streamed)
            pl.BlockSpec((1, ts_eff), lambda bi, p, j: (0, j)),         # fused encoder bias tile
            pl.BlockSpec((ts_eff, d_in), lambda bi, p, j: (j * p, 0)),  # W_dec row tile (phase 1 only)
            pl.BlockSpec((1, d_in), lambda bi, p, j: (0, 0)),           # b_dec (invariant, tiny)
        ],
        out_specs=out_specs,
        scratch_shapes=[
            pltpu.VMEM((tb_eff, d_in), jnp.float32),   # x_hat accumulator
            pltpu.VMEM((tb_eff, kpad), jnp.float32),   # running per-row top-k values
        ],
        compiler_params=pltpu.CompilerParams(
            dimension_semantics=("parallel", "arbitrary", "arbitrary"),
            vmem_limit_bytes=64 * 1024 * 1024,         # <= physical on v5e/v6e/v7x
        ),
    )(xp, w_enc_p, b_fused_p, w_dec_p, b_dec2)

    if output_features:
        xhat, enc = outs
        return xhat[:B], enc[:B, :d_sae]
    return outs[:B]


# ---------------------------------------------------------------------------
# Deterministic parameter init mirroring AutoEncoderTopK.__init__
# ---------------------------------------------------------------------------
def init_params(key, d_in, d_sae, dtype=jnp.float32):
    # kaiming_uniform_(W_enc, nonlinearity='relu'), torch fan_in convention.
    fan_in = d_sae
    bound = jnp.sqrt(2.0) * jnp.sqrt(3.0 / fan_in)
    w_enc = jax.random.uniform(key, (d_in, d_sae), dtype=dtype,
                               minval=-bound, maxval=bound)
    b_enc = jnp.zeros((d_sae,), dtype)
    # W_dec = W_enc.T with unit-norm rows.
    w_dec = w_enc.T
    eps = jnp.finfo(dtype).eps
    norm = jnp.linalg.norm(w_dec, axis=1, keepdims=True)
    w_dec = w_dec / (norm + eps)
    b_dec = jnp.zeros((d_in,), dtype)
    return w_enc, b_enc, w_dec, b_dec


# ---------------------------------------------------------------------------
# Pure-JAX reference for validation (matches the torch forward)
# ---------------------------------------------------------------------------
def reference_forward(x, w_enc, b_enc, w_dec, b_dec, k):
    pre = (x - b_dec) @ w_enc + b_enc
    h = jnp.maximum(pre, 0.0)
    vals, idx = lax.top_k(h, k)
    enc = jnp.zeros_like(h)
    enc = jax.vmap(lambda e, i, v: e.at[i].set(v))(enc, idx, vals)
    xhat = enc @ w_dec + b_dec
    return xhat, enc


if __name__ == "__main__":
    # Small shapes, chosen to exercise batch tiling (2 tiles), d_sae streaming
    # (2 tiles -> both phases over multiple tiles), and padding on both axes.
    B, d_in, d_sae, k = 24, 32, 192, 8

    key = jax.random.PRNGKey(0)
    kx, kw = jax.random.split(key)
    x = jax.random.normal(kx, (B, d_in), jnp.float32)
    w_enc, b_enc, w_dec, b_dec = init_params(kw, d_in, d_sae)

    # Forward with dense features; small tiles to exercise the streaming grid.
    xhat, enc = sae_topk_forward(x, w_enc, b_enc, w_dec, b_dec, k=k,
                                 tb=16, ts=128, output_features=True)
    # Default (production-sized) tiles, x_hat only: no dense enc writeback.
    xhat_only = sae_topk_forward(x, w_enc, b_enc, w_dec, b_dec, k=k)
    jax.block_until_ready((xhat, enc, xhat_only))

    xhat_ref, enc_ref = reference_forward(x, w_enc, b_enc, w_dec, b_dec, k)
    assert jnp.allclose(enc, enc_ref, rtol=1e-3, atol=1e-3), "encoded mismatch"
    assert jnp.allclose(xhat, xhat_ref, rtol=1e-3, atol=1e-3), "x_hat mismatch"
    assert jnp.allclose(xhat_only, xhat_ref, rtol=1e-3, atol=1e-3), \
        "x_hat (no-features variant) mismatch"

    print("KERNEL_OK")
</pallas_src>

<mosaic_0001>
module attributes {stable_mosaic.version = 11 : i64} {
  func.func @_sae_topk_kernel(%arg0: i32, %arg1: i32, %arg2: i32, %arg3: memref<16x32xf32, #tpu.memory_space<vmem>>, %arg4: memref<32x128xf32, #tpu.memory_space<vmem>>, %arg5: memref<1x128xf32, #tpu.memory_space<vmem>>, %arg6: memref<128x32xf32, #tpu.memory_space<vmem>>, %arg7: memref<1x32xf32, #tpu.memory_space<vmem>>, %arg8: memref<16x32xf32, #tpu.memory_space<vmem>>, %arg9: memref<16x128xf32, #tpu.memory_space<vmem>>, %arg10: memref<16x32xf32, #tpu.memory_space<vmem>>, %arg11: memref<16x128xf32, #tpu.memory_space<vmem>>) attributes {dimension_semantics = [#tpu.dimension_semantics<parallel>, #tpu.dimension_semantics<arbitrary>, #tpu.dimension_semantics<arbitrary>], iteration_bounds = array<i64: 2, 2, 2>, scalar_prefetch = 0 : i64, scratch_operands = 2 : i64, tpu.core_type = #tpu.core_type<tc>, window_params = [{transform_indices = @transform_0, window_bounds = array<i64: 16, 32>}, {transform_indices = @transform_1, window_bounds = array<i64: 32, 128>}, {transform_indices = @transform_2, window_bounds = array<i64: 1, 128>}, {transform_indices = @transform_3, window_bounds = array<i64: 128, 32>}, {pipeline_mode = #tpu.pipeline_mode<synchronous>, transform_indices = @transform_4, window_bounds = array<i64: 1, 32>}, {transform_indices = @transform_5, window_bounds = array<i64: 16, 32>}, {transform_indices = @transform_6, window_bounds = array<i64: 16, 128>}]} {
    %c0 = arith.constant 0 : index
    %c0_0 = arith.constant 0 : index
    %0 = vector.load %arg3[%c0, %c0_0] : memref<16x32xf32, #tpu.memory_space<vmem>>, vector<16x32xf32>
    %c0_1 = arith.constant 0 : index
    %c0_2 = arith.constant 0 : index
    %1 = vector.load %arg4[%c0_1, %c0_2] : memref<32x128xf32, #tpu.memory_space<vmem>>, vector<32x128xf32>
    %cst = arith.constant dense<0.000000e+00> : vector<16x128xf32>
    %2 = tpu.matmul %0, %1, %cst {dimension_numbers = #tpu.dot_dimension_numbers<[1], [0], [0], [1], [0, 0, 1, 1], [], []>} : vector<16x32xf32>, vector<32x128xf32>, vector<16x128xf32> -> vector<16x128xf32>
    %c0_3 = arith.constant 0 : index
    %c0_4 = arith.constant 0 : index
    %3 = vector.load %arg5[%c0_3, %c0_4] : memref<1x128xf32, #tpu.memory_space<vmem>>, vector<1x128xf32>
    %4 = vector.broadcast %3 : vector<1x128xf32> to vector<16x128xf32>
    %5 = arith.addf %2, %4 : vector<16x128xf32>
    %cst_5 = arith.constant 0.000000e+00 : f32
    %6 = vector.broadcast %cst_5 : f32 to vector<16x128xf32>
    %7 = arith.maximumf %5, %6 : vector<16x128xf32>
    %c0_i32 = arith.constant 0 : i32
    %8 = arith.cmpi eq, %arg1, %c0_i32 : i32
    %c0_i32_6 = arith.constant 0 : i32
    %9 = arith.cmpi eq, %arg2, %c0_i32_6 : i32
    %10 = arith.andi %8, %9 : i1
    %11 = arith.extui %10 : i1 to i32
    %cst_7 = arith.constant 0xFF800000 : f32
    %c0_i32_8 = arith.constant 0 : i32
    %12 = arith.cmpi ne, %11, %c0_i32_8 : i32
    scf.if %12 {
      %19 = vector.broadcast %cst_7 : f32 to vector<16x128xf32>
      %c0_13 = arith.constant 0 : index
      %c0_14 = arith.constant 0 : index
      %20 = vector.load %arg11[%c0_13, %c0_14] : memref<16x128xf32, #tpu.memory_space<vmem>>, vector<16x128xf32>
      tpu.vector_store %arg11[%c0_13, %c0_14], %19 {strides = array<i32>} : memref<16x128xf32, #tpu.memory_space<vmem>>, vector<16x128xf32>,
    } else {
    }
    %c0_i32_9 = arith.constant 0 : i32
    %13 = arith.cmpi eq, %arg1, %c0_i32_9 : i32
    %14 = arith.extui %13 : i1 to i32
    %cst_10 = arith.constant 0xFF800000 : f32
    %c0_i32_11 = arith.constant 0 : i32
    %15 = arith.cmpi ne, %14, %c0_i32_11 : i32
    scf.if %15 {
      %19 = tpu.iota {dimensions = array<i32: 1>} : vector<16x128xi32>
      %20 = vector.broadcast %cst_10 : f32 to vector<16x128xf32>
      %c0_13 = arith.constant 0 : index
      %c0_14 = arith.constant 0 : index
      %21 = vector.load %arg11[%c0_13, %c0_14] : memref<16x128xf32, #tpu.memory_space<vmem>>, vector<16x128xf32>
      %c0_i32_15 = arith.constant 0 : i32
      %cst_16 = arith.constant dense<0xFF800000> : vector<16xf32>
      %22 = vector.multi_reduction <maximumf>, %21, %cst_16 [1] : vector<16x128xf32> to vector<16xf32>
      %23 = vector.shape_cast %22 : vector<16xf32> to vector<16x1xf32>
      %cst_17 = arith.constant dense<0xFF800000> : vector<16xf32>
      %24 = vector.multi_reduction <maximumf>, %7, %cst_17 [1] : vector<16x128xf32> to vector<16xf32>
      %25 = vector.shape_cast %24 : vector<16xf32> to vector<16x1xf32>
      %26 = arith.maximumf %23, %25 : vector<16x1xf32>
      %27 = vector.broadcast %c0_i32_15 : i32 to vector<16x128xi32>
      %28 = arith.cmpi eq, %19, %27 : vector<16x128xi32>
      %29 = vector.shape_cast %26 : vector<16x1xf32> to vector<16x1xf32>
      %30 = vector.broadcast %29 : vector<16x1xf32> to vector<16x128xf32>
      %31 = arith.select %28, %30, %20 : vector<16x128xi1>, vector<16x128xf32>
      %32 = vector.broadcast %26 : vector<16x1xf32> to vector<16x128xf32>
      %33 = arith.cmpf oeq, %21, %32 : vector<16x128xf32>
      %34 = vector.broadcast %cst_10 : f32 to vector<16x128xf32>
      %35 = arith.select %33, %34, %21 : vector<16x128xi1>, vector<16x128xf32>
      %36 = vector.broadcast %26 : vector<16x1xf32> to vector<16x128xf32>
      %37 = arith.cmpf oeq, %7, %36 : vector<16x128xf32>
      %38 = vector.broadcast %cst_10 : f32 to vector<16x128xf32>
      %39 = arith.select %37, %38, %7 : vector<16x128xi1>, vector<16x128xf32>
      %c1_i32_18 = arith.constant 1 : i32
      %cst_19 = arith.constant dense<0xFF800000> : vector<16xf32>
      %40 = vector.multi_reduction <maximumf>, %35, %cst_19 [1] : vector<16x128xf32> to vector<16xf32>
      %41 = vector.shape_cast %40 : vector<16xf32> to vector<16x1xf32>
      %cst_20 = arith.constant dense<0xFF800000> : vector<16xf32>
      %42 = vector.multi_reduction <maximumf>, %39, %cst_20 [1] : vector<16x128xf32> to vector<16xf32>
      %43 = vector.shape_cast %42 : vector<16xf32> to vector<16x1xf32>
      %44 = arith.maximumf %41, %43 : vector<16x1xf32>
      %45 = vector.broadcast %c1_i32_18 : i32 to vector<16x128xi32>
      %46 = arith.cmpi eq, %19, %45 : vector<16x128xi32>
      %47 = vector.shape_cast %44 : vector<16x1xf32> to vector<16x1xf32>
      %48 = vector.broadcast %47 : vector<16x1xf32> to vector<16x128xf32>
      %49 = arith.select %46, %48, %31 : vector<16x128xi1>, vector<16x128xf32>
      %50 = vector.broadcast %44 : vector<16x1xf32> to vector<16x128xf32>
      %51 = arith.cmpf oeq, %35, %50 : vector<16x128xf32>
      %52 = vector.broadcast %cst_10 : f32 to vector<16x128xf32>
      %53 = arith.select %51, %52, %35 : vector<16x128xi1>, vector<16x128xf32>
      %54 = vector.broadcast %44 : vector<16x1xf32> to vector<16x128xf32>
      %55 = arith.cmpf oeq, %39, %54 : vector<16x128xf32>
      %56 = vector.broadcast %cst_10 : f32 to vector<16x128xf32>
      %57 = arith.select %55, %56, %39 : vector<16x128xi1>, vector<16x128xf32>
      %c2_i32 = arith.constant 2 : i32
      %cst_21 = arith.constant dense<0xFF800000> : vector<16xf32>
      %58 = vector.multi_reduction <maximumf>, %53, %cst_21 [1] : vector<16x128xf32> to vector<16xf32>
      %59 = vector.shape_cast %58 : vector<16xf32> to vector<16x1xf32>
      %cst_22 = arith.constant dense<0xFF800000> : vector<16xf32>
      %60 = vector.multi_reduction <maximumf>, %57, %cst_22 [1] : vector<16x128xf32> to vector<16xf32>
      %61 = vector.shape_cast %60 : vector<16xf32> to vector<16x1xf32>
      %62 = arith.maximumf %59, %61 : vector<16x1xf32>
      %63 = vector.broadcast %c2_i32 : i32 to vector<16x128xi32>
      %64 = arith.cmpi eq, %19, %63 : vector<16x128xi32>
      %65 = vector.shape_cast %62 : vector<16x1xf32> to vector<16x1xf32>
      %66 = vector.broadcast %65 : vector<16x1xf32> to vector<16x128xf32>
      %67 = arith.select %64, %66, %49 : vector<16x128xi1>, vector<16x128xf32>
      %68 = vector.broadcast %62 : vector<16x1xf32> to vector<16x128xf32>
      %69 = arith.cmpf oeq, %53, %68 : vector<16x128xf32>
      %70 = vector.broadcast %cst_10 : f32 to vector<16x128xf32>
      %71 = arith.select %69, %70, %53 : vector<16x128xi1>, vector<16x128xf32>
      %72 = vector.broadcast %62 : vector<16x1xf32> to vector<16x128xf32>
      %73 = arith.cmpf oeq, %57, %72 : vector<16x128xf32>
      %74 = vector.broadcast %cst_10 : f32 to vector<16x128xf32>
      %75 = arith.select %73, %74, %57 : vector<16x128xi1>, vector<16x128xf32>
      %c3_i32 = arith.constant 3 : i32
      %cst_23 = arith.constant dense<0xFF800000> : vector<16xf32>
      %76 = vector.multi_reduction <maximumf>, %71, %cst_23 [1] : vector<16x128xf32> to vector<16xf32>
      %77 = vector.shape_cast %76 : vector<16xf32> to vector<16x1xf32>
      %cst_24 = arith.constant dense<0xFF800000> : vector<16xf32>
      %78 = vector.multi_reduction <maximumf>, %75, %cst_24 [1] : vector<16x128xf32> to vector<16xf32>
      %79 = vector.shape_cast %78 : vector<16xf32> to vector<16x1xf32>
      %80 = arith.maximumf %77, %79 : vector<16x1xf32>
      %81 = vector.broadcast %c3_i32 : i32 to vector<16x128xi32>
      %82 = arith.cmpi eq, %19, %81 : vector<16x128xi32>
      %83 = vector.shape_cast %80 : vector<16x1xf32> to vector<16x1xf32>
      %84 = vector.broadcast %83 : vector<16x1xf32> to vector<16x128xf32>
      %85 = arith.select %82, %84, %67 : vector<16x128xi1>, vector<16x128xf32>
      %86 = vector.broadcast %80 : vector<16x1xf32> to vector<16x128xf32>
      %87 = arith.cmpf oeq, %71, %86 : vector<16x128xf32>
      %88 = vector.broadcast %cst_10 : f32 to vector<16x128xf32>
      %89 = arith.select %87, %88, %71 : vector<16x128xi1>, vector<16x128xf32>
      %90 = vector.broadcast %80 : vector<16x1xf32> to vector<16x128xf32>
      %91 = arith.cmpf oeq, %75, %90 : vector<16x128xf32>
      %92 = vector.broadcast %cst_10 : f32 to vector<16x128xf32>
      %93 = arith.select %91, %92, %75 : vector<16x128xi1>, vector<16x128xf32>
      %c4_i32 = arith.constant 4 : i32
      %cst_25 = arith.constant dense<0xFF800000> : vector<16xf32>
      %94 = vector.multi_reduction <maximumf>, %89, %cst_25 [1] : vector<16x128xf32> to vector<16xf32>
      %95 = vector.shape_cast %94 : vector<16xf32> to vector<16x1xf32>
      %cst_26 = arith.constant dense<0xFF800000> : vector<16xf32>
      %96 = vector.multi_reduction <maximumf>, %93, %cst_26 [1] : vector<16x128xf32> to vector<16xf32>
      %97 = vector.shape_cast %96 : vector<16xf32> to vector<16x1xf32>
      %98 = arith.maximumf %95, %97 : vector<16x1xf32>
      %99 = vector.broadcast %c4_i32 : i32 to vector<16x128xi32>
      %100 = arith.cmpi eq, %19, %99 : vector<16x128xi32>
      %101 = vector.shape_cast %98 : vector<16x1xf32> to vector<16x1xf32>
      %102 = vector.broadcast %101 : vector<16x1xf32> to vector<16x128xf32>
      %103 = arith.select %100, %102, %85 : vector<16x128xi1>, vector<16x128xf32>
      %104 = vector.broadcast %98 : vector<16x1xf32> to vector<16x128xf32>
      %105 = arith.cmpf oeq, %89, %104 : vector<16x128xf32>
      %106 = vector.broadcast %cst_10 : f32 to vector<16x128xf32>
      %107 = arith.select %105, %106, %89 : vector<16x128xi1>, vector<16x128xf32>
      %108 = vector.broadcast %98 : vector<16x1xf32> to vector<16x128xf32>
      %109 = arith.cmpf oeq, %93, %108 : vector<16x128xf32>
      %110 = vector.broadcast %cst_10 : f32 to vector<16x128xf32>
      %111 = arith.select %109, %110, %93 : vector<16x128xi1>, vector<16x128xf32>
      %c5_i32 = arith.constant 5 : i32
      %cst_27 = arith.constant dense<0xFF800000> : vector<16xf32>
      %112 = vector.multi_reduction <maximumf>, %107, %cst_27 [1] : vector<16x128xf32> to vector<16xf32>
      %113 = vector.shape_cast %112 : vector<16xf32> to vector<16x1xf32>
      %cst_28 = arith.constant dense<0xFF800000> : vector<16xf32>
      %114 = vector.multi_reduction <maximumf>, %111, %cst_28 [1] : vector<16x128xf32> to vector<16xf32>
      %115 = vector.shape_cast %114 : vector<16xf32> to vector<16x1xf32>
      %116 = arith.maximumf %113, %115 : vector<16x1xf32>
      %117 = vector.broadcast %c5_i32 : i32 to vector<16x128xi32>
      %118 = arith.cmpi eq, %19, %117 : vector<16x128xi32>
      %119 = vector.shape_cast %116 : vector<16x1xf32> to vector<16x1xf32>
      %120 = vector.broadcast %119 : vector<16x1xf32> to vector<16x128xf32>
      %121 = arith.select %118, %120, %103 : vector<16x128xi1>, vector<16x128xf32>
      %122 = vector.broadcast %116 : vector<16x1xf32> to vector<16x128xf32>
      %123 = arith.cmpf oeq, %107, %122 : vector<16x128xf32>
      %124 = vector.broadcast %cst_10 : f32 to vector<16x128xf32>
      %125 = arith.select %123, %124, %107 : vector<16x128xi1>, vector<16x128xf32>
      %126 = vector.broadcast %116 : vector<16x1xf32> to vector<16x128xf32>
      %127 = arith.cmpf oeq, %111, %126 : vector<16x128xf32>
      %128 = vector.broadcast %cst_10 : f32 to vector<16x128xf32>
      %129 = arith.select %127, %128, %111 : vector<16x128xi1>, vector<16x128xf32>
      %c6_i32 = arith.constant 6 : i32
      %cst_29 = arith.constant dense<0xFF800000> : vector<16xf32>
      %130 = vector.multi_reduction <maximumf>, %125, %cst_29 [1] : vector<16x128xf32> to vector<16xf32>
      %131 = vector.shape_cast %130 : vector<16xf32> to vector<16x1xf32>
      %cst_30 = arith.constant dense<0xFF800000> : vector<16xf32>
      %132 = vector.multi_reduction <maximumf>, %129, %cst_30 [1] : vector<16x128xf32> to vector<16xf32>
      %133 = vector.shape_cast %132 : vector<16xf32> to vector<16x1xf32>
      %134 = arith.maximumf %131, %133 : vector<16x1xf32>
      %135 = vector.broadcast %c6_i32 : i32 to vector<16x128xi32>
      %136 = arith.cmpi eq, %19, %135 : vector<16x128xi32>
      %137 = vector.shape_cast %134 : vector<16x1xf32> to vector<16x1xf32>
      %138 = vector.broadcast %137 : vector<16x1xf32> to vector<16x128xf32>
      %139 = arith.select %136, %138, %121 : vector<16x128xi1>, vector<16x128xf32>
      %140 = vector.broadcast %134 : vector<16x1xf32> to vector<16x128xf32>
      %141 = arith.cmpf oeq, %125, %140 : vector<16x128xf32>
      %142 = vector.broadcast %cst_10 : f32 to vector<16x128xf32>
      %143 = arith.select %141, %142, %125 : vector<16x128xi1>, vector<16x128xf32>
      %144 = vector.broadcast %134 : vector<16x1xf32> to vector<16x128xf32>
      %145 = arith.cmpf oeq, %129, %144 : vector<16x128xf32>
      %146 = vector.broadcast %cst_10 : f32 to vector<16x128xf32>
      %147 = arith.select %145, %146, %129 : vector<16x128xi1>, vector<16x128xf32>
      %c7_i32 = arith.constant 7 : i32
      %cst_31 = arith.constant dense<0xFF800000> : vector<16xf32>
      %148 = vector.multi_reduction <maximumf>, %143, %cst_31 [1] : vector<16x128xf32> to vector<16xf32>
      %149 = vector.shape_cast %148 : vector<16xf32> to vector<16x1xf32>
      %cst_32 = arith.constant dense<0xFF800000> : vector<16xf32>
      %150 = vector.multi_reduction <maximumf>, %147, %cst_32 [1] : vector<16x128xf32> to vector<16xf32>
      %151 = vector.shape_cast %150 : vector<16xf32> to vector<16x1xf32>
      %152 = arith.maximumf %149, %151 : vector<16x1xf32>
      %153 = vector.broadcast %c7_i32 : i32 to vector<16x128xi32>
      %154 = arith.cmpi eq, %19, %153 : vector<16x128xi32>
      %155 = vector.shape_cast %152 : vector<16x1xf32> to vector<16x1xf32>
      %156 = vector.broadcast %155 : vector<16x1xf32> to vector<16x128xf32>
      %157 = arith.select %154, %156, %139 : vector<16x128xi1>, vector<16x128xf32>
      %158 = vector.broadcast %152 : vector<16x1xf32> to vector<16x128xf32>
      %159 = arith.cmpf oeq, %143, %158 : vector<16x128xf32>
      %160 = vector.broadcast %cst_10 : f32 to vector<16x128xf32>
      %161 = arith.select %159, %160, %143 : vector<16x128xi1>, vector<16x128xf32>
      %162 = vector.broadcast %152 : vector<16x1xf32> to vector<16x128xf32>
      %163 = arith.cmpf oeq, %147, %162 : vector<16x128xf32>
      %164 = vector.broadcast %cst_10 : f32 to vector<16x128xf32>
      %165 = arith.select %163, %164, %147 : vector<16x128xi1>, vector<16x128xf32>
      %c8_i32 = arith.constant 8 : i32
      %c0_33 = arith.constant 0 : index
      %c0_34 = arith.constant 0 : index
      %166 = vector.load %arg11[%c0_33, %c0_34] : memref<16x128xf32, #tpu.memory_space<vmem>>, vector<16x128xf32>
      tpu.vector_store %arg11[%c0_33, %c0_34], %157 {strides = array<i32>} : memref<16x128xf32, #tpu.memory_space<vmem>>, vector<16x128xf32>,
    } else {
    }
    %c1_i32 = arith.constant 1 : i32
    %16 = arith.cmpi eq, %arg1, %c1_i32 : i32
    %17 = arith.extui %16 : i1 to i32
    %c0_i32_12 = arith.constant 0 : i32
    %18 = arith.cmpi ne, %17, %c0_i32_12 : i32
    scf.if %18 {
      %c0_i32_13 = arith.constant 0 : i32
      %19 = arith.cmpi eq, %arg2, %c0_i32_13 : i32
      %20 = arith.extui %19 : i1 to i32
      %c0_i32_14 = arith.constant 0 : i32
      %21 = arith.cmpi ne, %20, %c0_i32_14 : i32
      scf.if %21 {
        %cst_29 = arith.constant 0.000000e+00 : f32
        %37 = vector.broadcast %cst_29 : f32 to vector<16x32xf32>
        %c0_30 = arith.constant 0 : index
        %c0_31 = arith.constant 0 : index
        %38 = vector.load %arg10[%c0_30, %c0_31] : memref<16x32xf32, #tpu.memory_space<vmem>>, vector<16x32xf32>
        tpu.vector_store %arg10[%c0_30, %c0_31], %37 {strides = array<i32>} : memref<16x32xf32, #tpu.memory_space<vmem>>, vector<16x32xf32>,
      } else {
      }
      %c0_15 = arith.constant 0 : index
      %c0_16 = arith.constant 0 : index
      %22 = vector.load %arg11[%c0_15, %c0_16] : memref<16x128xf32, #tpu.memory_space<vmem>>, vector<16x128xf32>
      %23 = vector.extract_strided_slice %22 {offsets = [0, 7], sizes = [16, 1], strides = [1, 1]} : vector<16x128xf32> to vector<16x1xf32>
      %24 = vector.broadcast %23 : vector<16x1xf32> to vector<16x128xf32>
      %25 = arith.cmpf oge, %7, %24 : vector<16x128xf32>
      %cst_17 = arith.constant 0.000000e+00 : f32
      %26 = vector.broadcast %cst_17 : f32 to vector<16x128xf32>
      %27 = arith.select %25, %7, %26 : vector<16x128xi1>, vector<16x128xf32>
      %c0_18 = arith.constant 0 : index
      %c0_19 = arith.constant 0 : index
      %28 = vector.load %arg10[%c0_18, %c0_19] : memref<16x32xf32, #tpu.memory_space<vmem>>, vector<16x32xf32>
      %c0_20 = arith.constant 0 : index
      %c0_21 = arith.constant 0 : index
      %29 = vector.load %arg6[%c0_20, %c0_21] : memref<128x32xf32, #tpu.memory_space<vmem>>, vector<128x32xf32>
      %cst_22 = arith.constant dense<0.000000e+00> : vector<16x32xf32>
      %30 = tpu.matmul %27, %29, %cst_22 {dimension_numbers = #tpu.dot_dimension_numbers<[1], [0], [0], [1], [0, 0, 1, 1], [], []>} : vector<16x128xf32>, vector<128x32xf32>, vector<16x32xf32> -> vector<16x32xf32>
      %31 = arith.addf %28, %30 : vector<16x32xf32>
      %c0_23 = arith.constant 0 : index
      %c0_24 = arith.constant 0 : index
      %32 = vector.load %arg10[%c0_23, %c0_24] : memref<16x32xf32, #tpu.memory_space<vmem>>, vector<16x32xf32>
      tpu.vector_store %arg10[%c0_23, %c0_24], %31 {strides = array<i32>} : memref<16x32xf32, #tpu.memory_space<vmem>>, vector<16x32xf32>,
      %c0_25 = arith.constant 0 : index
      %c0_26 = arith.constant 0 : index
      %33 = vector.load %arg9[%c0_25, %c0_26] : memref<16x128xf32, #tpu.memory_space<vmem>>, vector<16x128xf32>
      tpu.vector_store %arg9[%c0_25, %c0_26], %27 {strides = array<i32>} : memref<16x128xf32, #tpu.memory_space<vmem>>, vector<16x128xf32>,
      %c1_i32_27 = arith.constant 1 : i32
      %34 = arith.cmpi eq, %arg2, %c1_i32_27 : i32
      %35 = arith.extui %34 : i1 to i32
      %c0_i32_28 = arith.constant 0 : i32
      %36 = arith.cmpi ne, %35, %c0_i32_28 : i32
      scf.if %36 {
        %c0_29 = arith.constant 0 : index
        %c0_30 = arith.constant 0 : index
        %37 = vector.load %arg10[%c0_29, %c0_30] : memref<16x32xf32, #tpu.memory_space<vmem>>, vector<16x32xf32>
        %c0_31 = arith.constant 0 : index
        %c0_32 = arith.constant 0 : index
        %38 = vector.load %arg7[%c0_31, %c0_32] : memref<1x32xf32, #tpu.memory_space<vmem>>, vector<1x32xf32>
        %39 = vector.broadcast %38 : vector<1x32xf32> to vector<16x32xf32>
        %40 = arith.addf %37, %39 : vector<16x32xf32>
        %c0_33 = arith.constant 0 : index
        %c0_34 = arith.constant 0 : index
        %41 = vector.load %arg8[%c0_33, %c0_34] : memref<16x32xf32, #tpu.memory_space<vmem>>, vector<16x32xf32>
        tpu.vector_store %arg8[%c0_33, %c0_34], %40 {strides = array<i32>} : memref<16x32xf32, #tpu.memory_space<vmem>>, vector<16x32xf32>,
      } else {
      }
    } else {
    }
    return
  }
  func.func @transform_0(%arg0: i32, %arg1: i32, %arg2: i32) -> (i32, i32) {
    %c0_i32 = arith.constant 0 : i32
    %c0_i32_0 = arith.constant 0 : i32
    return %arg0, %c0_i32 : i32, i32
  }
  func.func @transform_1(%arg0: i32, %arg1: i32, %arg2: i32) -> (i32, i32) {
    %c0_i32 = arith.constant 0 : i32
    %c0_i32_0 = arith.constant 0 : i32
    return %c0_i32, %arg2 : i32, i32
  }
  func.func @transform_2(%arg0: i32, %arg1: i32, %arg2: i32) -> (i32, i32) {
    %c0_i32 = arith.constant 0 : i32
    %c0_i32_0 = arith.constant 0 : i32
    return %c0_i32, %arg2 : i32, i32
  }
  func.func @transform_3(%arg0: i32, %arg1: i32, %arg2: i32) -> (i32, i32) {
    %0 = arith.muli %arg2, %arg1 : i32
    %c0_i32 = arith.constant 0 : i32
    %c0_i32_0 = arith.constant 0 : i32
    return %0, %c0_i32 : i32, i32
  }
  func.func @transform_4(%arg0: i32, %arg1: i32, %arg2: i32) -> (i32, i32) {
    %c0_i32 = arith.constant 0 : i32
    %c0_i32_0 = arith.constant 0 : i32
    %c0_i32_1 = arith.constant 0 : i32
    return %c0_i32, %c0_i32_0 : i32, i32
  }
  func.func @transform_5(%arg0: i32, %arg1: i32, %arg2: i32) -> (i32, i32) {
    %c0_i32 = arith.constant 0 : i32
    %c0_i32_0 = arith.constant 0 : i32
    return %arg0, %c0_i32 : i32, i32
  }
  func.func @transform_6(%arg0: i32, %arg1: i32, %arg2: i32) -> (i32, i32) {
    %0 = arith.muli %arg2, %arg1 : i32
    %c0_i32 = arith.constant 0 : i32
    return %arg0, %0 : i32, i32
  }
}

</mosaic_0001>

<llo_original>
// kernel: tpu_custom_call.1
$region0: #{tpu_custom_call.1}
  #allocation0 [shape = 'u32[]', space=smem, size = 0x4, offset = 0x4, fixed_abs, tag = 'smem constant byte address 0x4 - core index']
  #allocation1 [shape = 'u32[144,128]{1,0:T(1,128)}', space=vmem, size = 0x12000, scoped, tag = 'internal scratch']
  #allocation2 [shape = 'f32[16,32]{1,0:T(8,128)}', space=vmem, size = 0x2000, scoped, tag = 'scratch operand']
  #allocation3 [shape = 'f32[16,128]{1,0:T(8,128)}', space=vmem, size = 0x2000, scoped, tag = 'scratch operand']
  %s0 = inlined_call_operand.hbm [shape: f32[32,32], index: 0, kind: input, shape index: {}]
  %s1 = inlined_call_operand.hbm [shape: f32[32,256], index: 1, kind: input, shape index: {}]
  %s2 = inlined_call_operand.hbm [shape: f32[1,256], index: 2, kind: input, shape index: {}]
  %s3 = inlined_call_operand.hbm [shape: f32[256,32], index: 3, kind: input, shape index: {}]
  %s4 = inlined_call_operand.hbm [shape: f32[1,32], index: 4, kind: input, shape index: {}]
  %s5 = inlined_call_operand.hbm [shape: f32[32,32], index: 5, kind: output, shape index: {0}]
  %s6 = inlined_call_operand.hbm [shape: f32[32,256], index: 6, kind: output, shape index: {1}]
  %7 = xla_tuple %s5, %s6
  %s8 = sld [smem:[#allocation0]]
  $region101: #{tpu_custom_call.1} parent=0
    _
  %s10 = ssub.s32 1, %s8
  %s11 = scalar_select 0, %s10, %s8
  $region1: #{tpu_custom_call.1} parent=0
    #allocation4 [shape = 'u8[16384]{0}', space=vmem, size = 0x4000, scoped, tag = 'input window, operand 0']
    #allocation5 [shape = 's32[2]{0}', space=sflag, size = 0x8, scoped, tag = 'scoped memory for tpu_custom_call.1']
    #allocation6 [shape = 's32[2]{0}', space=sflag, size = 0x8, scoped, tag = 'scoped memory for tpu_custom_call.1']
    #allocation7 [shape = 'u8[32768]{0}', space=vmem, size = 0x8000, scoped, tag = 'input window, operand 1']
    #allocation8 [shape = 's32[2]{0}', space=sflag, size = 0x8, scoped, tag = 'scoped memory for tpu_custom_call.1']
    #allocation9 [shape = 'u8[1024]{0}', space=vmem, size = 0x400, scoped, tag = 'input window, operand 2']
    #allocation10 [shape = 'u8[131072]{0}', space=vmem, size = 0x20000, scoped, tag = 'input window, operand 3']
    #allocation11 [shape = 's32[2]{0}', space=sflag, size = 0x8, scoped, tag = 'scoped memory for tpu_custom_call.1']
    #allocation12 [shape = 'u8[512]{0}', space=vmem, size = 0x400, scoped, tag = 'input window, operand 4, single buffered']
    #allocation13 [shape = 'u8[16384]{0}', space=vmem, size = 0x4000, scoped, tag = 'output window, operand 0']
    #allocation14 [shape = 'u8[16384]{0}', space=vmem, size = 0x4000, scoped, tag = 'output window, operand 1']
    #allocation15 [shape = 's32[2]{0}', space=sflag, size = 0x8, scoped, tag = 'scoped memory for tpu_custom_call.1']
    %12 = vsyncpa [#allocation5], 0
    %s13 = scalar_lea.sflag [#allocation5], 1
    %14 = vsyncpa %s13, 0
    %15 = vsyncpa [#allocation8], 0
    %s16 = scalar_lea.sflag [#allocation8], 1
    %17 = vsyncpa %s16, 0
    %18 = vsyncpa [#allocation11], 0
    %s19 = scalar_lea.sflag [#allocation11], 1
    %20 = vsyncpa %s19, 0
    %21 = vsyncpa [#allocation6], 0
    %s22 = scalar_lea.sflag [#allocation6], 1
    %23 = vsyncpa %s22, 0
    %24 = vsyncpa [#allocation15], 0
    %s25 = scalar_lea.sflag [#allocation15], 1
    %26 = vsyncpa %s25, 0
    loop: start=0, step=1, limit=10
    $region2: #{tpu_custom_call.1} parent=1 // loop_pre_header
      _
    $region3: #{tpu_custom_call.1} parent=1 // loop_header
      %s28 = sphi 0, %s32
      %p29 = scmp.ge.s32.totalorder %s28, 10
      %s35 = sphi 0, %s54
      %s36 = sphi 0, %s50
      %s37 = sphi 0, %s46
      %s38 = sphi 0, %s35
      %s39 = sphi 0, %s36
      %s40 = sphi 0, %s37
      %s41 = sphi 0, %s38
      %s42 = sphi 0, %s39
      %s43 = sphi 0, %s40
      %s57 = sphi 0, %s59
      %s60 = sphi 0, %s57
      %s61 = sphi 0, %s60
      %s77 = sphi 0, %s61
      %s83 = sphi 0, %s85
      %s86 = sphi 0, %s83
      %s87 = sphi 0, %s86
      %s103 = sphi 0, %s87
      %s109 = sphi 0, %s111
      %s112 = sphi 0, %s109
      %s113 = sphi 0, %s112
      %s129 = sphi 0, %s113
      %s137 = sphi 0, %s139
      %s140 = sphi 0, %s137
      %s141 = sphi 0, %s140
      %s157 = sphi 0, %s141
      %s161 = sphi 0, %s161
      %s163 = sphi 0, %s161
      %s164 = sphi 0, %s163
      %s178 = sphi 0, %s164
      %s184 = sphi 0, %s186
      %s187 = sphi 0, %s184
      %s188 = sphi 0, %s187
      %s204 = sphi 0, %s188
      %s214 = sphi 0, %s216
      %s217 = sphi 0, %s214
      %s218 = sphi 0, %s217
      %s234 = sphi 0, %s218
    $region4: #{tpu_custom_call.1} parent=1 // loop_header_branch
      %31 = sbr.rel (%p29) target = $region8
    $region5: #{tpu_custom_call.1} parent=1 // loop_body
      %s33 = ssub.s32 %s28, 1
      %s34 = ssub.s32 %s28, 2
      %s44 = sadd.s32 1, %s37
      %p45 = scmp.ge.s32.totalorder %s44, 2
      %s46 = scalar_select %p45, 0, %s44
      %s47 = sadd.s32 1, %s36
      %s48 = scalar_select %p45, %s47, %s36
      %p49 = scmp.ge.s32.totalorder %s48, 2
      %s50 = scalar_select %p49, 0, %s48
      %s51 = sadd.s32 1, %s35
      %s52 = scalar_select %p49, %s51, %s35
      %p53 = scmp.ge.s32.totalorder %s52, 2
      %s54 = scalar_select %p53, 0, %s52
      %s55 = ssub.s32 %s35, %s54
      %p56 = scmp.eq.s32.totalorder %s55, 0
      %s58 = sadd.s32 %s57, 1
      %s59 = scalar_select %p56, %s57, %s58
      %p62 = pneg %p56
      %p63 = scmp.eq.s32.totalorder %s28, 7
      %p64 = por %p62, %p63
      %p65 = scmp.ne.s32.totalorder %s57, %s60
      %p66 = scmp.eq.s32.totalorder %s28, 0
      %p67 = por %p65, %p66
      %p68 = scmp.ne.s32.totalorder %s57, %s60
      %p69 = scmp.eq.s32.totalorder %s33, 7
      %p70 = por %p68, %p69
      %p71 = scmp.ne.s32.totalorder %s60, %s61
      %p72 = scmp.eq.s32.totalorder %s33, 0
      %p73 = por %p71, %p72
      %p74 = scmp.ne.s32.totalorder %s60, %s61
      %p75 = scmp.eq.s32.totalorder %s34, 7
      %p76 = por %p74, %p75
      %p78 = scmp.ne.s32.totalorder %s61, %s77
      %p79 = scmp.eq.s32.totalorder %s34, 0
      %p80 = por %p78, %p79
      %s81 = ssub.s32 %s37, %s46
      %p82 = scmp.eq.s32.totalorder %s81, 0
      %s84 = sadd.s32 %s83, 1
      %s85 = scalar_select %p82, %s83, %s84
      %p88 = pneg %p82
      %p89 = scmp.eq.s32.totalorder %s28, 7
      %p90 = por %p88, %p89
      %p91 = scmp.ne.s32.totalorder %s83, %s86
      %p92 = scmp.eq.s32.totalorder %s28, 0
      %p93 = por %p91, %p92
      %p94 = scmp.ne.s32.totalorder %s83, %s86
      %p95 = scmp.eq.s32.totalorder %s33, 7
      %p96 = por %p94, %p95
      %p97 = scmp.ne.s32.totalorder %s86, %s87
      %p98 = scmp.eq.s32.totalorder %s33, 0
      %p99 = por %p97, %p98
      %p100 = scmp.ne.s32.totalorder %s86, %s87
      %p101 = scmp.eq.s32.totalorder %s34, 7
      %p102 = por %p100, %p101
      %p104 = scmp.ne.s32.totalorder %s87, %s103
      %p105 = scmp.eq.s32.totalorder %s34, 0
      %p106 = por %p104, %p105
      %s107 = ssub.s32 %s37, %s46
      %p108 = scmp.eq.s32.totalorder %s107, 0
      %s110 = sadd.s32 %s109, 1
      %s111 = scalar_select %p108, %s109, %s110
      %p114 = pneg %p108
      %p115 = scmp.eq.s32.totalorder %s28, 7
      %p116 = por %p114, %p115
      %p117 = scmp.ne.s32.totalorder %s109, %s112
      %p118 = scmp.eq.s32.totalorder %s28, 0
      %p119 = por %p117, %p118
      %p120 = scmp.ne.s32.totalorder %s109, %s112
      %p121 = scmp.eq.s32.totalorder %s33, 7
      %p122 = por %p120, %p121
      %p123 = scmp.ne.s32.totalorder %s112, %s113
      %p124 = scmp.eq.s32.totalorder %s33, 0
      %p125 = por %p123, %p124
      %p126 = scmp.ne.s32.totalorder %s112, %s113
      %p127 = scmp.eq.s32.totalorder %s34, 7
      %p128 = por %p126, %p127
      %p130 = scmp.ne.s32.totalorder %s113, %s129
      %p131 = scmp.eq.s32.totalorder %s34, 0
      %p132 = por %p130, %p131
      %s133 = smul.u32 %s37, %s36
      %s134 = smul.u32 %s46, %s50
      %s135 = ssub.s32 %s133, %s134
      %p136 = scmp.eq.s32.totalorder %s135, 0
      %s138 = sadd.s32 %s137, 1
      %s139 = scalar_select %p136, %s137, %s138
      %p142 = pneg %p136
      %p143 = scmp.eq.s32.totalorder %s28, 7
      %p144 = por %p142, %p143
      %p145 = scmp.ne.s32.totalorder %s137, %s140
      %p146 = scmp.eq.s32.totalorder %s28, 0
      %p147 = por %p145, %p146
      %p148 = scmp.ne.s32.totalorder %s137, %s140
      %p149 = scmp.eq.s32.totalorder %s33, 7
      %p150 = por %p148, %p149
      %p151 = scmp.ne.s32.totalorder %s140, %s141
      %p152 = scmp.eq.s32.totalorder %s33, 0
      %p153 = por %p151, %p152
      %p154 = scmp.ne.s32.totalorder %s140, %s141
      %p155 = scmp.eq.s32.totalorder %s34, 7
      %p156 = por %p154, %p155
      %p158 = scmp.ne.s32.totalorder %s141, %s157
      %p159 = scmp.eq.s32.totalorder %s34, 0
      %p160 = por %p158, %p159
      %s162 = sadd.s32 %s161, 1
      %p165 = scmp.eq.s32.totalorder %s28, 7
      %p166 = scmp.ne.s32.totalorder %s161, %s163
      %p167 = scmp.eq.s32.totalorder %s28, 0
      %p168 = por %p166, %p167
      %p169 = scmp.ne.s32.totalorder %s161, %s163
      %p170 = scmp.eq.s32.totalorder %s33, 7
      %p171 = por %p169, %p170
      %p172 = scmp.ne.s32.totalorder %s163, %s164
      %p173 = scmp.eq.s32.totalorder %s33, 0
      %p174 = por %p172, %p173
      %p175 = scmp.ne.s32.totalorder %s163, %s164
      %p176 = scmp.eq.s32.totalorder %s34, 7
      %p177 = por %p175, %p176
      %p179 = scmp.ne.s32.totalorder %s164, %s178
      %p180 = scmp.eq.s32.totalorder %s34, 0
      %p181 = por %p179, %p180
      %s182 = ssub.s32 %s35, %s54
      %p183 = scmp.eq.s32.totalorder %s182, 0
      %s185 = sadd.s32 %s184, 1
      %s186 = scalar_select %p183, %s184, %s185
      %p189 = pneg %p183
      %p190 = scmp.eq.s32.totalorder %s28, 7
      %p191 = por %p189, %p190
      %p192 = scmp.ne.s32.totalorder %s184, %s187
      %p193 = scmp.eq.s32.totalorder %s28, 0
      %p194 = por %p192, %p193
      %p195 = scmp.ne.s32.totalorder %s184, %s187
      %p196 = scmp.eq.s32.totalorder %s33, 7
      %p197 = por %p195, %p196
      %p198 = scmp.ne.s32.totalorder %s187, %s188
      %p199 = scmp.eq.s32.totalorder %s33, 0
      %p200 = por %p198, %p199
      %p201 = scmp.ne.s32.totalorder %s187, %s188
      %p202 = scmp.eq.s32.totalorder %s34, 7
      %p203 = por %p201, %p202
      %p205 = scmp.ne.s32.totalorder %s188, %s204
      %p206 = scmp.eq.s32.totalorder %s34, 0
      %p207 = por %p205, %p206
      %s208 = smul.u32 %s37, %s36
      %s209 = smul.u32 %s46, %s50
      %s210 = ssub.s32 %s35, %s54
      %s211 = ssub.s32 %s208, %s209
      %s212 = sor.u32 %s210, %s211
      %p213 = scmp.eq.s32.totalorder %s212, 0
      %s215 = sadd.s32 %s214, 1
      %s216 = scalar_select %p213, %s214, %s215
      %p219 = pneg %p213
      %p220 = scmp.eq.s32.totalorder %s28, 7
      %p221 = por %p219, %p220
      %p222 = scmp.ne.s32.totalorder %s214, %s217
      %p223 = scmp.eq.s32.totalorder %s28, 0
      %p224 = por %p222, %p223
      %p225 = scmp.ne.s32.totalorder %s214, %s217
      %p226 = scmp.eq.s32.totalorder %s33, 7
      %p227 = por %p225, %p226
      %p228 = scmp.ne.s32.totalorder %s217, %s218
      %p229 = scmp.eq.s32.totalorder %s33, 0
      %p230 = por %p228, %p229
      %p231 = scmp.ne.s32.totalorder %s217, %s218
      %p232 = scmp.eq.s32.totalorder %s34, 7
      %p233 = por %p231, %p232
      %p235 = scmp.ne.s32.totalorder %s218, %s234
      %p236 = scmp.eq.s32.totalorder %s34, 0
      %p237 = por %p235, %p236
      %p238 = scmp.le.s32.totalorder 1, %s28
      %p239 = scmp.lt.s32.totalorder %s28, 9
      %p240 = pnand %p238, %p239
      %p241 = pneg %p240
      // Predicated region
      $region9: #{tpu_custom_call.1} parent=5 // pred_check
        _
      $region10: #{tpu_custom_call.1} parent=5 // pred_check_branch
        %243 = sbr.rel (%p240) target = $region12
      $region11: #{tpu_custom_call.1} parent=5 // pred_region
        %s244 = ssub.s32 %s28, 1
        // Predicated region
        $region13: #{tpu_custom_call.1} parent=11 // pred_check
          %p245 = pneg %p174
        $region14: #{tpu_custom_call.1} parent=11 // pred_check_branch
          %247 = sbr.rel (%p245) target = $region16
        $region15: #{tpu_custom_call.1} parent=11 // pred_region
          %s249 = ssub.s32 16, 16
          %250 = vsyncadd [#allocation11], %s249
          %s252 = sshll.u32 [#allocation12], 4
          %s253 = int_to_ptr.vmem [resolvable:$true] %s252
          %255 = dma.hbm_to_vmem [thread:$0]  %s4, 16, %s253, [#allocation11]
        $region16: #{tpu_custom_call.1} parent=11 // pred_fallthru
          _
      $region12: #{tpu_custom_call.1} parent=5 // pred_fallthru
        _
      %p256 = scmp.lt.s32.totalorder %s28, 8
      // Predicated region
      $region17: #{tpu_custom_call.1} parent=5 // pred_check
        %p257 = pneg %p256
      $region18: #{tpu_custom_call.1} parent=5 // pred_check_branch
        %259 = sbr.rel (%p257) target = $region20
      $region19: #{tpu_custom_call.1} parent=5 // pred_region
        // Predicated region
        $region21: #{tpu_custom_call.1} parent=19 // pred_check
          %p260 = pneg %p67
        $region22: #{tpu_custom_call.1} parent=19 // pred_check_branch
          %262 = sbr.rel (%p260) target = $region24
        $region23: #{tpu_custom_call.1} parent=19 // pred_region
          %s263 = sand.u32 %s57, 1
          %s264 = scalar_lea.sflag [#allocation5], %s263
          %s265 = sand.u32 %s57, 1
          %s266 = smul.addr %s265, 16
          %s267 = scalar_lea.vmem [#allocation4], %s266
          %s268 = smul.u32 2, %s35
          %s270 = ssub.s32 256, 256
          %271 = vsyncadd %s264, %s270
          %s272 = smul.addr %s268, 128
          %s273 = scalar_lea.hbm %s0, %s272
          %s274 = sshll.u32 %s267, 4
          %s275 = int_to_ptr.vmem [resolvable:$true] %s274
          %280 = dma.hbm_to_vmem [thread:$0]  %s273, 256, %s275, %s264, 128, 128, 8
        $region24: #{tpu_custom_call.1} parent=19 // pred_fallthru
          _
        // Predicated region
        $region25: #{tpu_custom_call.1} parent=19 // pred_check
          %p281 = pneg %p93
        $region26: #{tpu_custom_call.1} parent=19 // pred_check_branch
          %283 = sbr.rel (%p281) target = $region28
        $region27: #{tpu_custom_call.1} parent=19 // pred_region
          %s284 = sand.u32 %s28, 1
          %s285 = scalar_lea.sflag [#allocation8], %s284
          %s286 = sand.u32 %s83, 1
          %s287 = smul.addr %s286, 32
          %s288 = scalar_lea.vmem [#allocation7], %s287
          %s290 = ssub.s32 512, 512
          %291 = vsyncadd %s285, %s290
          %s292 = smul.addr %s37, 128
          %s293 = scalar_lea.hbm %s1, %s292
          %s294 = sshll.u32 %s288, 4
          %s295 = int_to_ptr.vmem [resolvable:$true] %s294
          %300 = dma.hbm_to_vmem [thread:$0]  %s293, 512, %s295, %s285, 256, 128, 8
        $region28: #{tpu_custom_call.1} parent=19 // pred_fallthru
          _
        // Predicated region
        $region29: #{tpu_custom_call.1} parent=19 // pred_check
          %p301 = pneg %p119
        $region30: #{tpu_custom_call.1} parent=19 // pred_check_branch
          %303 = sbr.rel (%p301) target = $region32
        $region31: #{tpu_custom_call.1} parent=19 // pred_region
          %s304 = sand.u32 %s28, 1
          %s305 = scalar_lea.sflag [#allocation8], %s304
          %s306 = sand.u32 %s109, 1
          %s307 = scalar_lea.vmem [#allocation9], %s306
          %s309 = ssub.s32 16, 16
          %310 = vsyncadd %s305, %s309
          %s311 = smul.addr %s37, 16
          %s312 = scalar_lea.hbm %s2, %s311
          %s314 = sshll.u32 %s307, 4
          %s315 = int_to_ptr.vmem [resolvable:$true] %s314
          %317 = dma.hbm_to_vmem [thread:$0]  %s312, 16, %s315, %s305
        $region32: #{tpu_custom_call.1} parent=19 // pred_fallthru
          _
        // Predicated region
        $region33: #{tpu_custom_call.1} parent=19 // pred_check
          %p318 = pneg %p147
        $region34: #{tpu_custom_call.1} parent=19 // pred_check_branch
          %320 = sbr.rel (%p318) target = $region36
        $region35: #{tpu_custom_call.1} parent=19 // pred_region
          %s321 = sand.u32 %s28, 1
          %s322 = scalar_lea.sflag [#allocation11], %s321
          %s323 = sand.u32 %s137, 1
          %s324 = smul.addr %s323, 128
          %s325 = scalar_lea.vmem [#allocation10], %s324
          %s326 = smul.u32 %s37, %s36
          %s327 = smul.u32 16, %s326
          %s329 = ssub.s32 2048, 2048
          %330 = vsyncadd %s322, %s329
          %s331 = smul.addr %s327, 128
          %s332 = scalar_lea.hbm %s3, %s331
          %s333 = sshll.u32 %s325, 4
          %s334 = int_to_ptr.vmem [resolvable:$true] %s333
          %339 = dma.hbm_to_vmem [thread:$0]  %s332, 2048, %s334, %s322, 128, 128, 8
        $region36: #{tpu_custom_call.1} parent=19 // pred_fallthru
          _
      $region20: #{tpu_custom_call.1} parent=5 // pred_fallthru
        _
      %p340 = scmp.le.s32.totalorder 1, %s28
      %p341 = scmp.lt.s32.totalorder %s28, 9
      %p342 = pnand %p340, %p341
      %p343 = pneg %p342
      // Predicated region
      $region37: #{tpu_custom_call.1} parent=5 // pred_check
        _
      $region38: #{tpu_custom_call.1} parent=5 // pred_check_branch
        %345 = sbr.rel (%p342) target = $region40
      $region39: #{tpu_custom_call.1} parent=5 // pred_region
        %s346 = ssub.s32 %s28, 1
        %s347 = sand.u32 %s60, 1
        %s348 = scalar_lea.sflag [#allocation5], %s347
        %s349 = sand.u32 %s60, 1
        %s350 = smul.addr %s349, 16
        %s351 = scalar_lea.vmem [#allocation4], %s350
        // Predicated region
        $region41: #{tpu_custom_call.1} parent=39 // pred_check
          %p352 = pneg %p73
        $region42: #{tpu_custom_call.1} parent=39 // pred_check_branch
          %354 = sbr.rel (%p352) target = $region44
        $region43: #{tpu_custom_call.1} parent=39 // pred_region
          %355 = dma.done %s348, 256
        $region44: #{tpu_custom_call.1} parent=39 // pred_fallthru
          _
        %s356 = sand.u32 %s33, 1
        %s357 = scalar_lea.sflag [#allocation8], %s356
        %s358 = sand.u32 %s86, 1
        %s359 = smul.addr %s358, 32
        %s360 = scalar_lea.vmem [#allocation7], %s359
        // Predicated region
        $region45: #{tpu_custom_call.1} parent=39 // pred_check
          %p361 = pneg %p99
        $region46: #{tpu_custom_call.1} parent=39 // pred_check_branch
          %363 = sbr.rel (%p361) target = $region48
        $region47: #{tpu_custom_call.1} parent=39 // pred_region
          %364 = dma.done %s357, 512
        $region48: #{tpu_custom_call.1} parent=39 // pred_fallthru
          _
        %s365 = sand.u32 %s33, 1
        %s366 = scalar_lea.sflag [#allocation8], %s365
        %s367 = sand.u32 %s112, 1
        %s368 = scalar_lea.vmem [#allocation9], %s367
        // Predicated region
        $region49: #{tpu_custom_call.1} parent=39 // pred_check
          %p369 = pneg %p125
        $region50: #{tpu_custom_call.1} parent=39 // pred_check_branch
          %371 = sbr.rel (%p369) target = $region52
        $region51: #{tpu_custom_call.1} parent=39 // pred_region
          %372 = dma.done %s366, 16
        $region52: #{tpu_custom_call.1} parent=39 // pred_fallthru
          _
        %s373 = sand.u32 %s33, 1
        %s374 = scalar_lea.sflag [#allocation11], %s373
        %s375 = sand.u32 %s140, 1
        %s376 = smul.addr %s375, 128
        %s377 = scalar_lea.vmem [#allocation10], %s376
        // Predicated region
        $region53: #{tpu_custom_call.1} parent=39 // pred_check
          %p378 = pneg %p153
        $region54: #{tpu_custom_call.1} parent=39 // pred_check_branch
          %380 = sbr.rel (%p378) target = $region56
        $region55: #{tpu_custom_call.1} parent=39 // pred_region
          %381 = dma.done %s374, 2048
        $region56: #{tpu_custom_call.1} parent=39 // pred_fallthru
          _
        // Predicated region
        $region57: #{tpu_custom_call.1} parent=39 // pred_check
          %p382 = pneg %p174
        $region58: #{tpu_custom_call.1} parent=39 // pred_check_branch
          %384 = sbr.rel (%p382) target = $region60
        $region59: #{tpu_custom_call.1} parent=39 // pred_region
          %385 = dma.done [#allocation11], 16
        $region60: #{tpu_custom_call.1} parent=39 // pred_fallthru
          _
        %s386 = sand.u32 %s60, 1
        %s387 = scalar_lea.sflag [#allocation5], %s386
        %s388 = sand.u32 %s60, 1
        %s389 = smul.addr %s388, 16
        %s390 = scalar_lea.vmem [#allocation4], %s389
        %p391 = pneg %p73
        %p392 = pneg %p70
        %s393 = sand.u32 %s33, 1
        %s394 = scalar_lea.sflag [#allocation8], %s393
        %s395 = sand.u32 %s86, 1
        %s396 = smul.addr %s395, 32
        %s397 = scalar_lea.vmem [#allocation7], %s396
        %p398 = pneg %p99
        %p399 = pneg %p96
        %s400 = sand.u32 %s33, 1
        %s401 = scalar_lea.sflag [#allocation8], %s400
        %s402 = sand.u32 %s112, 1
        %s403 = scalar_lea.vmem [#allocation9], %s402
        %p404 = pneg %p125
        %p405 = pneg %p122
        %s406 = sand.u32 %s33, 1
        %s407 = scalar_lea.sflag [#allocation11], %s406
        %s408 = sand.u32 %s140, 1
        %s409 = smul.addr %s408, 128
        %s410 = scalar_lea.vmem [#allocation10], %s409
        %p411 = pneg %p153
        %p412 = pneg %p150
        %p413 = pneg %p174
        %p414 = pneg %p171
        %p415 = pneg %p200
        %p416 = pneg %p197
        %s417 = sand.u32 %s187, 1
        %s418 = scalar_lea.sflag [#allocation6], %s417
        %s419 = sand.u32 %s187, 1
        %s420 = smul.addr %s419, 16
        %s421 = scalar_lea.vmem [#allocation13], %s420
        %p422 = pneg %p230
        %p423 = pneg %p227
        %s424 = sand.u32 %s217, 1
        %s425 = scalar_lea.sflag [#allocation15], %s424
        %s426 = sand.u32 %s217, 1
        %s427 = smul.addr %s426, 16
        %s428 = scalar_lea.vmem [#allocation14], %s427
        %s429 = smul.u32 2, %s38
        %s430 = smul.u32 %s40, %s39
        %s431 = smul.u32 16, %s430
        %s432 = smul.u32 2, %s38
        %s433 = smul.u32 %s40, %s39
        %s434 = smul.u32 2, %s38
        %v435 = vld [vmem:[%s351] sm:$0xff]
        %v436 = vld [vmem:[%s351 + $0x8] sm:$0xff]
        %v437 = vld [vmem:[%s360] sm:$0xff]
        %v438 = vld [vmem:[%s360 + $0x8] sm:$0xff]
        %v439 = vld [vmem:[%s360 + $0x10] sm:$0xff]
        %v440 = vld [vmem:[%s360 + $0x18] sm:$0xff]
        %v441 = vld [vmem:[%s368] sm:$0x1]
        %v443 = vlaneseq
        %v444 = vshrl.u32 %v443, 7
        %v445 = vsub.s32 0, %v444
        %v446 = vrot.slane %v441, %v445
        %vm448 = vcmask 261120
        %v450 = vsel %vm448, %v435, 0
        %v453 = vsel %vm448, %v436, 0
        %455 = vmatprep.subr.mxu0 0.0
        %456 = vmatpush1.msra.mxu0 %v437
        %457 = vmatprep.subr.mxu0 0.0
        %458 = vmatpush1.msra.mxu0 %v438
        %459 = vmatprep.subr.mxu0 0.0
        %460 = vmatpush1.msra.mxu0 %v439
        %461 = vmatprep.subr.mxu0 0.0
        %462 = vmatpush1.msra.mxu0 %v440
        %463 = vmatprep.subr.mxu0 0.0
        %464 = vmatpush1.msra.mxu0 0.0
        %465 = vmatprep.subr.mxu0 0.0
        %466 = vmatpush1.msra.mxu0 0.0
        %467 = vmatprep.subr.mxu0 0.0
        %468 = vmatpush1.msra.mxu0 0.0
        %469 = vmatprep.subr.mxu0 0.0
        %470 = vmatpush1.msra.mxu0 0.0
        %471 = vmatprep.subr.mxu0 0.0
        %472 = vmatpush1.msra.mxu0 0.0
        %473 = vmatprep.subr.mxu0 0.0
        %474 = vmatpush1.msra.mxu0 0.0
        %475 = vmatprep.subr.mxu0 0.0
        %476 = vmatpush1.msra.mxu0 0.0
        %477 = vmatprep.subr.mxu0 0.0
        %478 = vmatpush1.msra.mxu0 0.0
        %479 = vmatprep.subr.mxu0 0.0
        %480 = vmatpush1.msra.mxu0 0.0
        %481 = vmatprep.subr.mxu0 0.0
        %482 = vmatpush1.msra.mxu0 0.0
        %483 = vmatprep.subr.mxu0 0.0
        %484 = vmatpush1.msra.mxu0 0.0
        %485 = vmatprep.subr.mxu0 0.0
        %486 = vmatpush1.msra.mxu0 0.0
        %487 = vmatprep.subr.mxu0 0.0
        %488 = vmatpush1.msra.mxu0 0.0
        %489 = vmatprep.subr.mxu0 0.0
        %490 = vmatpush1.msra.mxu0 0.0
        %491 = vmatprep.subr.mxu0 0.0
        %492 = vmatpush1.msra.mxu0 0.0
        %493 = vmatprep.subr.mxu0 0.0
        %494 = vmatpush1.msra.mxu0 0.0
        %495 = vmatprep.subr.mxu0 0.0
        %496 = vmatpush1.msra.mxu0 0.0
        %497 = vmatprep.subr.mxu0 0.0
        %498 = vmatpush1.msra.mxu0 0.0
        %499 = vmatprep.subr.mxu0 0.0
        %500 = vmatpush1.msra.mxu0 0.0
        %501 = vmatprep.subr.mxu0 0.0
        %502 = vmatpush1.msra.mxu0 0.0
        %503 = vmatprep.subr.mxu0 0.0
        %504 = vmatpush1.msra.mxu0 0.0
        %505 = vmatprep.subr.mxu0 0.0
        %506 = vmatpush1.msra.mxu0 0.0
        %507 = vmatprep.subr.mxu0 0.0
        %508 = vmatpush1.msra.mxu0 0.0
        %509 = vmatprep.subr.mxu0 0.0
        %510 = vmatpush1.msra.mxu0 0.0
        %511 = vmatprep.subr.mxu0 0.0
        %512 = vmatpush1.msra.mxu0 0.0
        %513 = vmatprep.subr.mxu0 0.0
        %514 = vmatpush1.msra.mxu0 0.0
        %515 = vmatprep.subr.mxu0 0.0
        %516 = vmatpush1.msra.mxu0 0.0
        %517 = vmatprep.subr.mxu0 0.0
        %518 = vmatpush1.msra.mxu0 0.0
        %519 = vmatprep.mubr.f32.mxu0 0.0
        %520 = vmatmul.mubr.f32.gmra.mrb[0].mxu0 %v450
        %v521 = vpop.f32.mrb[0].mxu0
        %v522 = vadd.f32 %v446, %v521
        %v523 = vpop.f32.mrb[0].mxu0
        %524 = vmatprep.mubr.f32.mxu0 0.0
        %525 = vmatmul.mubr.f32.gmra.mrb[0].mxu0 %v453
        %v526 = vpop.f32.mrb[0].mxu0
        %v527 = vadd.f32 %v446, %v526
        %v528 = vpop.f32.mrb[0].mxu0
        %529 = vdwg.mxu0
        %v530 = vmax.f32 %v522, 0.0
        %v531 = vmax.f32 %v527, 0.0
        %p532 = scmp.eq.s32.totalorder %s39, 0
        %p533 = scmp.eq.s32.totalorder %s40, 0
        %p534 = pnand %p532, %p533
        %p535 = pneg %p534
        // Predicated region
        $region61: #{tpu_custom_call.1} parent=39 // pred_check
          _
        $region62: #{tpu_custom_call.1} parent=39 // pred_check_branch
          %537 = sbr.rel (%p534) target = $region64
        $region63: #{tpu_custom_call.1} parent=39 // pred_region
          %538 = vst [vmem:[#allocation3] sm:$0xff] -inf
          %539 = vst [vmem:[#allocation3 + $0x8] sm:$0xff] -inf
        $region64: #{tpu_custom_call.1} parent=39 // pred_fallthru
          _
        // Predicated region
        $region65: #{tpu_custom_call.1} parent=39 // pred_check
          %p540 = pneg %p532
        $region66: #{tpu_custom_call.1} parent=39 // pred_check_branch
          %542 = sbr.rel (%p540) target = $region68
        $region67: #{tpu_custom_call.1} parent=39 // pred_region
          %v543 = vlaneseq
          %v544 = vand.u32 %v543, 127
          %v545 = vld [vmem:[#allocation3] sm:$0xff]
          %v546 = vld [vmem:[#allocation3 + $0x8] sm:$0xff]
          %547 = vmax.xlane.f32.xlu0 %v545
          %v548 = vpop.xlane.xlu0 %547
          %549 = vmax.xlane.f32.xlu0 %v546
          %v550 = vpop.xlane.xlu0 %549
          %551 = vmax.xlane.f32.xlu0 %v530
          %v552 = vpop.xlane.xlu0 %551
          %553 = vmax.xlane.f32.xlu0 %v531
          %v554 = vpop.xlane.xlu0 %553
          %v555 = vmax.f32 %v548, %v552
          %v556 = vmax.f32 %v550, %v554
          %vm557 = vcmp.eq.s32.totalorder %v544, 0
          %v558 = vsel %vm557, %v555, -inf
          %v559 = vsel %vm557, %v556, -inf
          %vm560 = vcmp.eq.f32.partialorder %v545, %v555
          %vm561 = vcmp.eq.f32.partialorder %v546, %v556
          %v562 = vsel %vm560, -inf, %v545
          %v563 = vsel %vm561, -inf, %v546
          %vm564 = vcmp.eq.f32.partialorder %v530, %v555
          %vm565 = vcmp.eq.f32.partialorder %v531, %v556
          %v566 = vsel %vm564, -inf, %v530
          %v567 = vsel %vm565, -inf, %v531
          %568 = vmax.xlane.f32.xlu0 %v562
          %v569 = vpop.xlane.xlu0 %568
          %570 = vmax.xlane.f32.xlu0 %v563
          %v571 = vpop.xlane.xlu0 %570
          %572 = vmax.xlane.f32.xlu0 %v566
          %v573 = vpop.xlane.xlu0 %572
          %574 = vmax.xlane.f32.xlu0 %v567
          %v575 = vpop.xlane.xlu0 %574
          %v576 = vmax.f32 %v569, %v573
          %v577 = vmax.f32 %v571, %v575
          %vm578 = vcmp.eq.s32.totalorder %v544, 1
          %v579 = vsel %vm578, %v576, %v558
          %v580 = vsel %vm578, %v577, %v559
          %vm581 = vcmp.eq.f32.partialorder %v562, %v576
          %vm582 = vcmp.eq.f32.partialorder %v563, %v577
          %v583 = vsel %vm581, -inf, %v562
          %v584 = vsel %vm582, -inf, %v563
          %vm585 = vcmp.eq.f32.partialorder %v566, %v576
          %vm586 = vcmp.eq.f32.partialorder %v567, %v577
          %v587 = vsel %vm585, -inf, %v566
          %v588 = vsel %vm586, -inf, %v567
          %589 = vmax.xlane.f32.xlu0 %v583
          %v590 = vpop.xlane.xlu0 %589
          %591 = vmax.xlane.f32.xlu0 %v584
          %v592 = vpop.xlane.xlu0 %591
          %593 = vmax.xlane.f32.xlu0 %v587
          %v594 = vpop.xlane.xlu0 %593
          %595 = vmax.xlane.f32.xlu0 %v588
          %v596 = vpop.xlane.xlu0 %595
          %v597 = vmax.f32 %v590, %v594
          %v598 = vmax.f32 %v592, %v596
          %vm599 = vcmp.eq.s32.totalorder %v544, 2
          %v600 = vsel %vm599, %v597, %v579
          %v601 = vsel %vm599, %v598, %v580
          %vm602 = vcmp.eq.f32.partialorder %v583, %v597
          %vm603 = vcmp.eq.f32.partialorder %v584, %v598
          %v604 = vsel %vm602, -inf, %v583
          %v605 = vsel %vm603, -inf, %v584
          %vm606 = vcmp.eq.f32.partialorder %v587, %v597
          %vm607 = vcmp.eq.f32.partialorder %v588, %v598
          %v608 = vsel %vm606, -inf, %v587
          %v609 = vsel %vm607, -inf, %v588
          %610 = vmax.xlane.f32.xlu0 %v604
          %v611 = vpop.xlane.xlu0 %610
          %612 = vmax.xlane.f32.xlu0 %v605
          %v613 = vpop.xlane.xlu0 %612
          %614 = vmax.xlane.f32.xlu0 %v608
          %v615 = vpop.xlane.xlu0 %614
          %616 = vmax.xlane.f32.xlu0 %v609
          %v617 = vpop.xlane.xlu0 %616
          %v618 = vmax.f32 %v611, %v615
          %v619 = vmax.f32 %v613, %v617
          %vm620 = vcmp.eq.s32.totalorder %v544, 3
          %v621 = vsel %vm620, %v618, %v600
          %v622 = vsel %vm620, %v619, %v601
          %vm623 = vcmp.eq.f32.partialorder %v604, %v618
          %vm624 = vcmp.eq.f32.partialorder %v605, %v619
          %v625 = vsel %vm623, -inf, %v604
          %v626 = vsel %vm624, -inf, %v605
          %vm627 = vcmp.eq.f32.partialorder %v608, %v618
          %vm628 = vcmp.eq.f32.partialorder %v609, %v619
          %v629 = vsel %vm627, -inf, %v608
          %v630 = vsel %vm628, -inf, %v609
          %631 = vmax.xlane.f32.xlu0 %v625
          %v632 = vpop.xlane.xlu0 %631
          %633 = vmax.xlane.f32.xlu0 %v626
          %v634 = vpop.xlane.xlu0 %633
          %635 = vmax.xlane.f32.xlu0 %v629
          %v636 = vpop.xlane.xlu0 %635
          %637 = vmax.xlane.f32.xlu0 %v630
          %v638 = vpop.xlane.xlu0 %637
          %v639 = vmax.f32 %v632, %v636
          %v640 = vmax.f32 %v634, %v638
          %vm641 = vcmp.eq.s32.totalorder %v544, 4
          %v642 = vsel %vm641, %v639, %v621
          %v643 = vsel %vm641, %v640, %v622
          %vm644 = vcmp.eq.f32.partialorder %v625, %v639
          %vm645 = vcmp.eq.f32.partialorder %v626, %v640
          %v646 = vsel %vm644, -inf, %v625
          %v647 = vsel %vm645, -inf, %v626
          %vm648 = vcmp.eq.f32.partialorder %v629, %v639
          %vm649 = vcmp.eq.f32.partialorder %v630, %v640
          %v650 = vsel %vm648, -inf, %v629
          %v651 = vsel %vm649, -inf, %v630
          %652 = vmax.xlane.f32.xlu0 %v646
          %v653 = vpop.xlane.xlu0 %652
          %654 = vmax.xlane.f32.xlu0 %v647
          %v655 = vpop.xlane.xlu0 %654
          %656 = vmax.xlane.f32.xlu0 %v650
          %v657 = vpop.xlane.xlu0 %656
          %658 = vmax.xlane.f32.xlu0 %v651
          %v659 = vpop.xlane.xlu0 %658
          %v660 = vmax.f32 %v653, %v657
          %v661 = vmax.f32 %v655, %v659
          %vm662 = vcmp.eq.s32.totalorder %v544, 5
          %v663 = vsel %vm662, %v660, %v642
          %v664 = vsel %vm662, %v661, %v643
          %vm665 = vcmp.eq.f32.partialorder %v646, %v660
          %vm666 = vcmp.eq.f32.partialorder %v647, %v661
          %v667 = vsel %vm665, -inf, %v646
          %v668 = vsel %vm666, -inf, %v647
          %vm669 = vcmp.eq.f32.partialorder %v650, %v660
          %vm670 = vcmp.eq.f32.partialorder %v651, %v661
          %v671 = vsel %vm669, -inf, %v650
          %v672 = vsel %vm670, -inf, %v651
          %673 = vmax.xlane.f32.xlu0 %v667
          %v674 = vpop.xlane.xlu0 %673
          %675 = vmax.xlane.f32.xlu0 %v668
          %v676 = vpop.xlane.xlu0 %675
          %677 = vmax.xlane.f32.xlu0 %v671
          %v678 = vpop.xlane.xlu0 %677
          %679 = vmax.xlane.f32.xlu0 %v672
          %v680 = vpop.xlane.xlu0 %679
          %v681 = vmax.f32 %v674, %v678
          %v682 = vmax.f32 %v676, %v680
          %vm683 = vcmp.eq.s32.totalorder %v544, 6
          %v684 = vsel %vm683, %v681, %v663
          %v685 = vsel %vm683, %v682, %v664
          %vm686 = vcmp.eq.f32.partialorder %v667, %v681
          %vm687 = vcmp.eq.f32.partialorder %v668, %v682
          %v688 = vsel %vm686, -inf, %v667
          %v689 = vsel %vm687, -inf, %v668
          %vm690 = vcmp.eq.f32.partialorder %v671, %v681
          %vm691 = vcmp.eq.f32.partialorder %v672, %v682
          %v692 = vsel %vm690, -inf, %v671
          %v693 = vsel %vm691, -inf, %v672
          %694 = vmax.xlane.f32.xlu0 %v688
          %v695 = vpop.xlane.xlu0 %694
          %696 = vmax.xlane.f32.xlu0 %v689
          %v697 = vpop.xlane.xlu0 %696
          %698 = vmax.xlane.f32.xlu0 %v692
          %v699 = vpop.xlane.xlu0 %698
          %700 = vmax.xlane.f32.xlu0 %v693
          %v701 = vpop.xlane.xlu0 %700
          %v702 = vmax.f32 %v695, %v699
          %v703 = vmax.f32 %v697, %v701
          %vm704 = vcmp.eq.s32.totalorder %v544, 7
          %v705 = vsel %vm704, %v702, %v684
          %v706 = vsel %vm704, %v703, %v685
          %707 = vst [vmem:[#allocation3] sm:$0xff] %v705
          %708 = vst [vmem:[#allocation3 + $0x8] sm:$0xff] %v706
        $region68: #{tpu_custom_call.1} parent=39 // pred_fallthru
          _
        %p709 = scmp.eq.s32.totalorder %s39, 1
        // Predicated region
        $region69: #{tpu_custom_call.1} parent=39 // pred_check
          %p710 = pneg %p709
        $region70: #{tpu_custom_call.1} parent=39 // pred_check_branch
          %712 = sbr.rel (%p710) target = $region72
        $region71: #{tpu_custom_call.1} parent=39 // pred_region
          // Predicated region
          $region73: #{tpu_custom_call.1} parent=71 // pred_check
            %p713 = pneg %p533
          $region74: #{tpu_custom_call.1} parent=71 // pred_check_branch
            %715 = sbr.rel (%p713) target = $region76
          $region75: #{tpu_custom_call.1} parent=71 // pred_region
            %716 = vst.msk [vmem:[#allocation2] sm:$0xff] %vm448, 0.0
            %717 = vst.msk [vmem:[#allocation2 + $0x8] sm:$0xff] %vm448, 0.0
          $region76: #{tpu_custom_call.1} parent=71 // pred_fallthru
            _
          %v718 = vld [vmem:[#allocation3] sm:$0xff]
          %v719 = vld [vmem:[#allocation3 + $0x8] sm:$0xff]
          %721 = vset.pattern.permute.xlu0 7
          %722 = vperm.xlu0 %721, %v718
          %v723 = vpop.permute.xlu0 %722
          %726 = vset.pattern.permute.xlu0 7
          %727 = vperm.xlu0 %726, %v719
          %v728 = vpop.permute.xlu0 %727
          %vm730 = vcmp.ge.f32.partialorder %v530, %v723
          %vm731 = vcmp.ge.f32.partialorder %v531, %v728
          %v732 = vsel %vm730, %v530, 0.0
          %v733 = vsel %vm731, %v531, 0.0
          %v734 = vld [vmem:[#allocation2] sm:$0xff]
          %v735 = vld [vmem:[#allocation2 + $0x8] sm:$0xff]
          %v736 = vld [vmem:[%s377] sm:$0xff]
          %v737 = vld [vmem:[%s377 + $0x8] sm:$0xff]
          %v738 = vld [vmem:[%s377 + $0x10] sm:$0xff]
          %v739 = vld [vmem:[%s377 + $0x18] sm:$0xff]
          %v740 = vld [vmem:[%s377 + $0x20] sm:$0xff]
          %v741 = vld [vmem:[%s377 + $0x28] sm:$0xff]
          %v742 = vld [vmem:[%s377 + $0x30] sm:$0xff]
          %v743 = vld [vmem:[%s377 + $0x38] sm:$0xff]
          %v744 = vld [vmem:[%s377 + $0x40] sm:$0xff]
          %v745 = vld [vmem:[%s377 + $0x48] sm:$0xff]
          %v746 = vld [vmem:[%s377 + $0x50] sm:$0xff]
          %v747 = vld [vmem:[%s377 + $0x58] sm:$0xff]
          %v748 = vld [vmem:[%s377 + $0x60] sm:$0xff]
          %v749 = vld [vmem:[%s377 + $0x68] sm:$0xff]
          %v750 = vld [vmem:[%s377 + $0x70] sm:$0xff]
          %v751 = vld [vmem:[%s377 + $0x78] sm:$0xff]
          %752 = vmatprep.subr.mxu0 0.0
          %753 = vmatpush1.msra.mxu0 %v736
          %754 = vmatprep.subr.mxu0 0.0
          %755 = vmatpush1.msra.mxu0 %v737
          %756 = vmatprep.subr.mxu0 0.0
          %757 = vmatpush1.msra.mxu0 %v738
          %758 = vmatprep.subr.mxu0 0.0
          %759 = vmatpush1.msra.mxu0 %v739
          %760 = vmatprep.subr.mxu0 0.0
          %761 = vmatpush1.msra.mxu0 %v740
          %762 = vmatprep.subr.mxu0 0.0
          %763 = vmatpush1.msra.mxu0 %v741
          %764 = vmatprep.subr.mxu0 0.0
          %765 = vmatpush1.msra.mxu0 %v742
          %766 = vmatprep.subr.mxu0 0.0
          %767 = vmatpush1.msra.mxu0 %v743
          %768 = vmatprep.subr.mxu0 0.0
          %769 = vmatpush1.msra.mxu0 %v744
          %770 = vmatprep.subr.mxu0 0.0
          %771 = vmatpush1.msra.mxu0 %v745
          %772 = vmatprep.subr.mxu0 0.0
          %773 = vmatpush1.msra.mxu0 %v746
          %774 = vmatprep.subr.mxu0 0.0
          %775 = vmatpush1.msra.mxu0 %v747
          %776 = vmatprep.subr.mxu0 0.0
          %777 = vmatpush1.msra.mxu0 %v748
          %778 = vmatprep.subr.mxu0 0.0
          %779 = vmatpush1.msra.mxu0 %v749
          %780 = vmatprep.subr.mxu0 0.0
          %781 = vmatpush1.msra.mxu0 %v750
          %782 = vmatprep.subr.mxu0 0.0
          %783 = vmatpush1.msra.mxu0 %v751
          %784 = vmatprep.subr.mxu0 0.0
          %785 = vmatpush1.msra.mxu0 0.0
          %786 = vmatprep.subr.mxu0 0.0
          %787 = vmatpush1.msra.mxu0 0.0
          %788 = vmatprep.subr.mxu0 0.0
          %789 = vmatpush1.msra.mxu0 0.0
          %790 = vmatprep.subr.mxu0 0.0
          %791 = vmatpush1.msra.mxu0 0.0
          %792 = vmatprep.subr.mxu0 0.0
          %793 = vmatpush1.msra.mxu0 0.0
          %794 = vmatprep.subr.mxu0 0.0
          %795 = vmatpush1.msra.mxu0 0.0
          %796 = vmatprep.subr.mxu0 0.0
          %797 = vmatpush1.msra.mxu0 0.0
          %798 = vmatprep.subr.mxu0 0.0
          %799 = vmatpush1.msra.mxu0 0.0
          %800 = vmatprep.subr.mxu0 0.0
          %801 = vmatpush1.msra.mxu0 0.0
          %802 = vmatprep.subr.mxu0 0.0
          %803 = vmatpush1.msra.mxu0 0.0
          %804 = vmatprep.subr.mxu0 0.0
          %805 = vmatpush1.msra.mxu0 0.0
          %806 = vmatprep.subr.mxu0 0.0
          %807 = vmatpush1.msra.mxu0 0.0
          %808 = vmatprep.subr.mxu0 0.0
          %809 = vmatpush1.msra.mxu0 0.0
          %810 = vmatprep.subr.mxu0 0.0
          %811 = vmatpush1.msra.mxu0 0.0
          %812 = vmatprep.subr.mxu0 0.0
          %813 = vmatpush1.msra.mxu0 0.0
          %814 = vmatprep.subr.mxu0 0.0
          %815 = vmatpush1.msra.mxu0 0.0
          %816 = vmatprep.mubr.f32.mxu0 0.0
          %817 = vmatmul.mubr.f32.gmra.mrb[0].mxu0 %v732
          %v818 = vpop.f32.mrb[0].mxu0
          %v819 = vadd.f32 0.0, %v818
          %v820 = vpop.f32.mrb[0].mxu0
          %821 = vmatprep.mubr.f32.mxu0 0.0
          %822 = vmatmul.mubr.f32.gmra.mrb[0].mxu0 %v733
          %v823 = vpop.f32.mrb[0].mxu0
          %v824 = vadd.f32 0.0, %v823
          %v825 = vpop.f32.mrb[0].mxu0
          %826 = vdwg.mxu0
          %v827 = vadd.f32 %v734, %v819
          %v828 = vadd.f32 %v735, %v824
          %829 = vst.msk [vmem:[#allocation2] sm:$0xff] %vm448, %v827
          %830 = vst.msk [vmem:[#allocation2 + $0x8] sm:$0xff] %vm448, %v828
          %831 = vst [vmem:[%s428] sm:$0xff] %v732
          %832 = vst [vmem:[%s428 + $0x8] sm:$0xff] %v733
          %p833 = scmp.eq.s32.totalorder %s40, 1
          // Predicated region
          $region77: #{tpu_custom_call.1} parent=71 // pred_check
            %p834 = pneg %p833
          $region78: #{tpu_custom_call.1} parent=71 // pred_check_branch
            %836 = sbr.rel (%p834) target = $region80
          $region79: #{tpu_custom_call.1} parent=71 // pred_region
            %v837 = vld [vmem:[#allocation2] sm:$0xff]
            %v838 = vld [vmem:[#allocation2 + $0x8] sm:$0xff]
            %v839 = vld [vmem:[#allocation12] sm:$0x1]
            %v841 = vlaneseq
            %v842 = vshrl.u32 %v841, 7
            %v843 = vsub.s32 0, %v842
            %v844 = vrot.slane %v839, %v843
            %v846 = vadd.f32 %v837, %v844
            %v847 = vadd.f32 %v838, %v844
            %848 = vst.msk [vmem:[%s421] sm:$0xff] %vm448, %v846
            %849 = vst.msk [vmem:[%s421 + $0x8] sm:$0xff] %vm448, %v847
          $region80: #{tpu_custom_call.1} parent=71 // pred_fallthru
            _
        $region72: #{tpu_custom_call.1} parent=39 // pred_fallthru
          _
        %s850 = sand.u32 %s187, 1
        %s851 = scalar_lea.sflag [#allocation6], %s850
        %s852 = sand.u32 %s187, 1
        %s853 = smul.addr %s852, 16
        %s854 = scalar_lea.vmem [#allocation13], %s853
        %s855 = sand.u32 %s217, 1
        %s856 = scalar_lea.sflag [#allocation15], %s855
        %s857 = sand.u32 %s217, 1
        %s858 = smul.addr %s857, 16
        %s859 = scalar_lea.vmem [#allocation14], %s858
        // Predicated region
        $region81: #{tpu_custom_call.1} parent=39 // pred_check
          %p860 = pneg %p197
        $region82: #{tpu_custom_call.1} parent=39 // pred_check_branch
          %862 = sbr.rel (%p860) target = $region84
        $region83: #{tpu_custom_call.1} parent=39 // pred_region
          %s863 = smul.u32 2, %s38
          %s865 = ssub.s32 256, 256
          %866 = vsyncadd %s851, %s865
          %s867 = smul.addr %s863, 128
          %s868 = scalar_lea.hbm %s5, %s867
          %s869 = sshll.u32 %s854, 4
          %s870 = int_to_ptr.vmem [resolvable:$true] %s869
          %875 = dma.vmem_to_hbm [thread:$0]  %s870, 256, %s868, %s851, 128, 128, 8
        $region84: #{tpu_custom_call.1} parent=39 // pred_fallthru
          _
        // Predicated region
        $region85: #{tpu_custom_call.1} parent=39 // pred_check
          %p876 = pneg %p227
        $region86: #{tpu_custom_call.1} parent=39 // pred_check_branch
          %878 = sbr.rel (%p876) target = $region88
        $region87: #{tpu_custom_call.1} parent=39 // pred_region
          %s879 = smul.u32 %s40, %s39
          %s880 = smul.u32 2, %s38
          %s882 = ssub.s32 256, 256
          %883 = vsyncadd %s856, %s882
          %s884 = smul.addr %s880, 2
          %s885 = sadd.s32 %s879, %s884
          %s886 = smul.addr %s885, 128
          %s887 = scalar_lea.hbm %s6, %s886
          %s888 = sshll.u32 %s859, 4
          %s889 = int_to_ptr.vmem [resolvable:$true] %s888
          %894 = dma.vmem_to_hbm [thread:$0]  %s889, 256, %s887, %s856, 128, 256, 8
        $region88: #{tpu_custom_call.1} parent=39 // pred_fallthru
          _
      $region40: #{tpu_custom_call.1} parent=5 // pred_fallthru
        _
      %p895 = scmp.le.s32.totalorder 2, %s28
      // Predicated region
      $region89: #{tpu_custom_call.1} parent=5 // pred_check
        %p896 = pneg %p895
      $region90: #{tpu_custom_call.1} parent=5 // pred_check_branch
        %898 = sbr.rel (%p896) target = $region92
      $region91: #{tpu_custom_call.1} parent=5 // pred_region
        %s899 = ssub.s32 %s28, 2
        // Predicated region
        $region93: #{tpu_custom_call.1} parent=91 // pred_check
          %p900 = pneg %p203
        $region94: #{tpu_custom_call.1} parent=91 // pred_check_branch
          %902 = sbr.rel (%p900) target = $region96
        $region95: #{tpu_custom_call.1} parent=91 // pred_region
          %s903 = sand.u32 %s188, 1
          %s904 = scalar_lea.sflag [#allocation6], %s903
          %s905 = sand.u32 %s188, 1
          %s906 = smul.addr %s905, 16
          %s907 = scalar_lea.vmem [#allocation13], %s906
          %908 = dma.done %s904, 256
        $region96: #{tpu_custom_call.1} parent=91 // pred_fallthru
          _
        // Predicated region
        $region97: #{tpu_custom_call.1} parent=91 // pred_check
          %p909 = pneg %p233
        $region98: #{tpu_custom_call.1} parent=91 // pred_check_branch
          %911 = sbr.rel (%p909) target = $region100
        $region99: #{tpu_custom_call.1} parent=91 // pred_region
          %s912 = sand.u32 %s218, 1
          %s913 = scalar_lea.sflag [#allocation15], %s912
          %s914 = sand.u32 %s218, 1
          %s915 = smul.addr %s914, 16
          %s916 = scalar_lea.vmem [#allocation14], %s915
          %917 = dma.done %s913, 256
        $region100: #{tpu_custom_call.1} parent=91 // pred_fallthru
          _
      $region92: #{tpu_custom_call.1} parent=5 // pred_fallthru
        _
    $region6: #{tpu_custom_call.1} parent=1 // loop_footer
      %s32 = sadd.s32 1, %s28
    $region7: #{tpu_custom_call.1} parent=1 // loop_footer_branch
      %27 = sbr.rel target = $region3
    $region8: #{tpu_custom_call.1} parent=1 // loop_exit
      _
    %918 = vsyncpa [#allocation5], 1
    %s919 = scalar_lea.sflag [#allocation5], 1
    %920 = vsyncpa %s919, 1
    %921 = vsyncpa [#allocation8], 1
    %s922 = scalar_lea.sflag [#allocation8], 1
    %923 = vsyncpa %s922, 1
    %924 = vsyncpa [#allocation11], 1
    %s925 = scalar_lea.sflag [#allocation11], 1
    %926 = vsyncpa %s925, 1
    %927 = vsyncpa [#allocation6], 1
    %s928 = scalar_lea.sflag [#allocation6], 1
    %929 = vsyncpa %s928, 1
    %930 = vsyncpa [#allocation15], 1
    %s931 = scalar_lea.sflag [#allocation15], 1
    %932 = vsyncpa %s931, 1

</llo_original>
